<compile_context>
chip_gen: v7x
topology: tpu7x:2x2x1
jax: 0.10.0
libtpu: 0.0.40
codegen_flags: <defaults>
</compile_context>

<pallas_src>
import jax
import jax.numpy as jnp
from jax.experimental import pallas as pl
from jax.experimental.pallas import tpu as pltpu

_LANES = 128
_SUBLANES = 8

_PI = 3.14159265358979323846
_PI_2 = 1.5707963267948966
_PI_4 = 0.7853981633974483
_TAN_PI_8 = 0.41421356237309503


def _freblock_kernel(xr_ref, xi_ref, mag_ref, pha_ref):
    """Element-wise magnitude/phase over a lane-dense (row_tile, 128) block.

    NOTE: in the ragged last grid block the rows past the array extent hold
    undefined VMEM contents; they may produce Inf/NaN below, but Pallas masks
    those rows on store, so this is benign by construction.  Do not "fix" it.
    """
    f32 = jnp.float32
    xr = xr_ref[...] + f32(1e-8)          # x = x + 1e-08 (adds to real part)
    xi = xi_ref[...]

    # Magnitude.  FFT-domain features are O(1) f32 here, so no hypot-style
    # scaling is needed (naive form only overflows for |x| > ~1.8e19).
    mag_ref[...] = jnp.sqrt(xr * xr + xi * xi)

    # Phase = atan2(xi, xr).  Range-reduce to |t| <= tan(pi/8) using ONE
    # divide: select numerator/denominator first, then divide once.
    ax = jnp.abs(xr)
    ay = jnp.abs(xi)
    big = jnp.maximum(ax, ay)
    small = jnp.minimum(ax, ay)
    hi = small > f32(_TAN_PI_8) * big                 # == (small/big) > tan(pi/8)
    num = jnp.where(hi, small - big, small)
    den = jnp.maximum(jnp.where(hi, small + big, big), f32(1e-30))  # 0/0 -> 0

    # Divide on the EUP slot: approx reciprocal + one Newton step + residual
    # refinement of the quotient (accurate to ~1 ulp, safe for 1e-5 checks).
    inv = pl.reciprocal(den, approx=True)
    inv = inv * (f32(2.0) - den * inv)
    t = num * inv
    t = t + inv * (num - den * t)

    # Cephes atanf polynomial, odd and valid on |t| <= tan(pi/8).
    z = t * t
    p = ((f32(8.05374449538e-2) * z
          - f32(1.38776856032e-1)) * z
         + f32(1.99777106478e-1)) * z \
        - f32(3.33329491539e-1)
    r = jnp.where(hi, f32(_PI_4), f32(0.0)) + (p * z * t + t)

    # Quadrant fix-ups (r >= 0 after these two selects).
    r = jnp.where(ay > ax, f32(_PI_2) - r, r)
    r = jnp.where(xr < f32(0.0), f32(_PI) - r, r)

    # copysign(r, xi): r >= 0 here, so just OR in xi's sign bit.
    sign = pltpu.bitcast(xi, jnp.uint32) & jnp.uint32(0x80000000)
    pha_ref[...] = pltpu.bitcast(pltpu.bitcast(r, jnp.uint32) | sign,
                                 jnp.float32)


def freblock_forward(x, *, row_tile=1024):
    """x: complex (or real) array of any shape.  Returns (mag, pha), float32,
    same shape as x.

    row_tile: rows of 128 lanes per grid step (rounded to a multiple of 8).
    1024 (0.5 MiB per plane per step) fits every chip's scoped-VMEM budget
    with margin; on v7x, passing 2048-4096 further amortizes the ~0.35 us
    per-step overhead against its 3.2 TB/s HBM.
    """
    orig_shape = x.shape
    # TODO(synk): fold the complex de-interleave into the kernel (single
    # interleaved (rows, 256) input) to save one HBM pass; kept as two f32
    # planes here because stride-2 lane de-interleave lowering is fragile.
    xr = jnp.real(x).astype(jnp.float32)
    xi = jnp.imag(x).astype(jnp.float32)
    n = xr.size

    rows = pl.cdiv(n, _LANES)
    pad = rows * _LANES - n
    if pad:  # only when numel % 128 != 0; pad just to the next 128 multiple
        xr = jnp.pad(xr.reshape(-1), (0, pad))
        xi = jnp.pad(xi.reshape(-1), (0, pad))
    xr2 = xr.reshape(rows, _LANES)     # free reshape when pad == 0
    xi2 = xi.reshape(rows, _LANES)

    # Row tile: multiple of 8 sublanes; the ragged last block (rows % rt != 0)
    # is handled by Pallas' boundary masking, so rows is NOT rounded up to rt.
    rows8 = pl.cdiv(rows, _SUBLANES) * _SUBLANES
    rt = max(_SUBLANES, (min(row_tile, rows8) // _SUBLANES) * _SUBLANES)
    grid = (pl.cdiv(rows, rt),)

    spec = pl.BlockSpec((rt, _LANES), lambda i: (i, 0))
    out_sds = jax.ShapeDtypeStruct((rows, _LANES), jnp.float32)

    mag, pha = pl.pallas_call(
        _freblock_kernel,
        out_shape=(out_sds, out_sds),
        grid_spec=pltpu.PrefetchScalarGridSpec(
            num_scalar_prefetch=0,
            grid=grid,
            in_specs=[spec, spec],
            out_specs=(spec, spec),
        ),
        compiler_params=pltpu.CompilerParams(
            dimension_semantics=("parallel",),
            vmem_limit_bytes=32 * 1024 * 1024,
        ),
    )(xr2, xi2)

    if pad:  # only for numel % 128 != 0
        mag = mag.reshape(-1)[:n]
        pha = pha.reshape(-1)[:n]
    return mag.reshape(orig_shape), pha.reshape(orig_shape)


def freblock_reference(x):
    """Pure-JAX reference mirroring the PyTorch forward."""
    xs = x + 1e-8
    return jnp.abs(xs), jnp.angle(xs)


if __name__ == "__main__":
    key = jax.random.PRNGKey(0)
    kr, ki = jax.random.split(key)
    N, C, H, W = 2, 4, 16, 16
    # FreBlock operates on a complex (FFT-domain) feature map in Enlight;
    # build a deterministic complex input covering all four quadrants.
    xre = jax.random.normal(kr, (N, C, H, W), jnp.float32)
    xim = jax.random.normal(ki, (N, C, H, W), jnp.float32)
    x = jax.lax.complex(xre, xim)

    mag, pha = freblock_forward(x)
    mag, pha = jax.block_until_ready((mag, pha))

    mag_ref, pha_ref = freblock_reference(x)
    assert mag.shape == (N, C, H, W) and pha.shape == (N, C, H, W)
    assert jnp.allclose(mag, mag_ref, atol=1e-5, rtol=1e-5), \
        f"mag max err {jnp.max(jnp.abs(mag - mag_ref))}"
    assert jnp.allclose(pha, pha_ref, atol=1e-5, rtol=1e-5), \
        f"pha max err {jnp.max(jnp.abs(pha - pha_ref))}"
    print("KERNEL_OK")
</pallas_src>

<mosaic_0001>
module attributes {stable_mosaic.version = 11 : i64} {
  func.func @_freblock_kernel(%arg0: i32, %arg1: memref<16x128xf32, #tpu.memory_space<vmem>>, %arg2: memref<16x128xf32, #tpu.memory_space<vmem>>, %arg3: memref<16x128xf32, #tpu.memory_space<vmem>>, %arg4: memref<16x128xf32, #tpu.memory_space<vmem>>) attributes {dimension_semantics = [#tpu.dimension_semantics<parallel>], iteration_bounds = array<i64: 1>, scalar_prefetch = 0 : i64, scratch_operands = 0 : i64, tpu.core_type = #tpu.core_type<tc>, window_params = [{transform_indices = @transform_0, window_bounds = array<i64: 16, 128>}, {transform_indices = @transform_1, window_bounds = array<i64: 16, 128>}, {transform_indices = @transform_2, window_bounds = array<i64: 16, 128>}, {transform_indices = @transform_3, window_bounds = array<i64: 16, 128>}]} {
    %c0 = arith.constant 0 : index
    %c0_0 = arith.constant 0 : index
    %0 = vector.load %arg1[%c0, %c0_0] : memref<16x128xf32, #tpu.memory_space<vmem>>, vector<16x128xf32>
    %cst = arith.constant 9.99999993E-9 : f32
    %1 = vector.broadcast %cst : f32 to vector<16x128xf32>
    %2 = arith.addf %0, %1 : vector<16x128xf32>
    %c0_1 = arith.constant 0 : index
    %c0_2 = arith.constant 0 : index
    %3 = vector.load %arg2[%c0_1, %c0_2] : memref<16x128xf32, #tpu.memory_space<vmem>>, vector<16x128xf32>
    %4 = arith.mulf %2, %2 : vector<16x128xf32>
    %5 = arith.mulf %3, %3 : vector<16x128xf32>
    %6 = arith.addf %4, %5 : vector<16x128xf32>
    %7 = math.sqrt %6 : vector<16x128xf32>
    %c0_3 = arith.constant 0 : index
    %c0_4 = arith.constant 0 : index
    %8 = vector.load %arg3[%c0_3, %c0_4] : memref<16x128xf32, #tpu.memory_space<vmem>>, vector<16x128xf32>
    tpu.vector_store %arg3[%c0_3, %c0_4], %7 {strides = array<i32>} : memref<16x128xf32, #tpu.memory_space<vmem>>, vector<16x128xf32>,
    %9 = math.absf %2 : vector<16x128xf32>
    %10 = math.absf %3 : vector<16x128xf32>
    %11 = arith.maximumf %9, %10 : vector<16x128xf32>
    %12 = arith.minimumf %9, %10 : vector<16x128xf32>
    %cst_5 = arith.constant 0.414213568 : f32
    %13 = vector.broadcast %cst_5 : f32 to vector<16x128xf32>
    %14 = arith.mulf %13, %11 : vector<16x128xf32>
    %15 = arith.cmpf ogt, %12, %14 : vector<16x128xf32>
    %16 = arith.subf %12, %11 : vector<16x128xf32>
    %17 = arith.select %15, %16, %12 : vector<16x128xi1>, vector<16x128xf32>
    %18 = arith.addf %12, %11 : vector<16x128xf32>
    %19 = arith.select %15, %18, %11 : vector<16x128xi1>, vector<16x128xf32>
    %cst_6 = arith.constant 1.000000e-30 : f32
    %20 = vector.broadcast %cst_6 : f32 to vector<16x128xf32>
    %21 = arith.maximumf %19, %20 : vector<16x128xf32>
    %22 = tpu.reciprocal %21 {approx = true} : vector<16x128xf32> -> vector<16x128xf32>
    %23 = arith.mulf %21, %22 : vector<16x128xf32>
    %cst_7 = arith.constant 2.000000e+00 : f32
    %24 = vector.broadcast %cst_7 : f32 to vector<16x128xf32>
    %25 = arith.subf %24, %23 : vector<16x128xf32>
    %26 = arith.mulf %22, %25 : vector<16x128xf32>
    %27 = arith.mulf %17, %26 : vector<16x128xf32>
    %28 = arith.mulf %21, %27 : vector<16x128xf32>
    %29 = arith.subf %17, %28 : vector<16x128xf32>
    %30 = arith.mulf %26, %29 : vector<16x128xf32>
    %31 = arith.addf %27, %30 : vector<16x128xf32>
    %32 = arith.mulf %31, %31 : vector<16x128xf32>
    %cst_8 = arith.constant 0.0805374458 : f32
    %33 = vector.broadcast %cst_8 : f32 to vector<16x128xf32>
    %34 = arith.mulf %33, %32 : vector<16x128xf32>
    %cst_9 = arith.constant 0.138776854 : f32
    %35 = vector.broadcast %cst_9 : f32 to vector<16x128xf32>
    %36 = arith.subf %34, %35 : vector<16x128xf32>
    %37 = arith.mulf %36, %32 : vector<16x128xf32>
    %cst_10 = arith.constant 0.199777111 : f32
    %38 = vector.broadcast %cst_10 : f32 to vector<16x128xf32>
    %39 = arith.addf %37, %38 : vector<16x128xf32>
    %40 = arith.mulf %39, %32 : vector<16x128xf32>
    %cst_11 = arith.constant 0.333329499 : f32
    %41 = vector.broadcast %cst_11 : f32 to vector<16x128xf32>
    %42 = arith.subf %40, %41 : vector<16x128xf32>
    %cst_12 = arith.constant 0.785398185 : f32
    %cst_13 = arith.constant 0.000000e+00 : f32
    %43 = vector.broadcast %cst_12 : f32 to vector<16x128xf32>
    %44 = vector.broadcast %cst_13 : f32 to vector<16x128xf32>
    %45 = arith.select %15, %43, %44 : vector<16x128xi1>, vector<16x128xf32>
    %46 = arith.mulf %42, %32 : vector<16x128xf32>
    %47 = arith.mulf %46, %31 : vector<16x128xf32>
    %48 = arith.addf %47, %31 : vector<16x128xf32>
    %49 = arith.addf %45, %48 : vector<16x128xf32>
    %50 = arith.cmpf ogt, %10, %9 : vector<16x128xf32>
    %cst_14 = arith.constant 1.57079637 : f32
    %51 = vector.broadcast %cst_14 : f32 to vector<16x128xf32>
    %52 = arith.subf %51, %49 : vector<16x128xf32>
    %53 = arith.select %50, %52, %49 : vector<16x128xi1>, vector<16x128xf32>
    %cst_15 = arith.constant 0.000000e+00 : f32
    %54 = vector.broadcast %cst_15 : f32 to vector<16x128xf32>
    %55 = arith.cmpf olt, %2, %54 : vector<16x128xf32>
    %cst_16 = arith.constant 3.14159274 : f32
    %56 = vector.broadcast %cst_16 : f32 to vector<16x128xf32>
    %57 = arith.subf %56, %53 : vector<16x128xf32>
    %58 = arith.select %55, %57, %53 : vector<16x128xi1>, vector<16x128xf32>
    %59 = tpu.bitcast %3 : vector<16x128xf32> -> vector<16x128xi32>
    %c-2147483648_i32 = arith.constant -2147483648 : i32
    %60 = vector.broadcast %c-2147483648_i32 : i32 to vector<16x128xi32>
    %61 = arith.andi %59, %60 : vector<16x128xi32>
    %62 = tpu.bitcast %58 : vector<16x128xf32> -> vector<16x128xi32>
    %63 = arith.ori %62, %61 : vector<16x128xi32>
    %64 = tpu.bitcast %63 : vector<16x128xi32> -> vector<16x128xf32>
    %c0_17 = arith.constant 0 : index
    %c0_18 = arith.constant 0 : index
    %65 = vector.load %arg4[%c0_17, %c0_18] : memref<16x128xf32, #tpu.memory_space<vmem>>, vector<16x128xf32>
    tpu.vector_store %arg4[%c0_17, %c0_18], %64 {strides = array<i32>} : memref<16x128xf32, #tpu.memory_space<vmem>>, vector<16x128xf32>,
    return
  }
  func.func @transform_0(%arg0: i32) -> (i32, i32) {
    %c0_i32 = arith.constant 0 : i32
    %c0_i32_0 = arith.constant 0 : i32
    return %arg0, %c0_i32 : i32, i32
  }
  func.func @transform_1(%arg0: i32) -> (i32, i32) {
    %c0_i32 = arith.constant 0 : i32
    %c0_i32_0 = arith.constant 0 : i32
    return %arg0, %c0_i32 : i32, i32
  }
  func.func @transform_2(%arg0: i32) -> (i32, i32) {
    %c0_i32 = arith.constant 0 : i32
    %c0_i32_0 = arith.constant 0 : i32
    return %arg0, %c0_i32 : i32, i32
  }
  func.func @transform_3(%arg0: i32) -> (i32, i32) {
    %c0_i32 = arith.constant 0 : i32
    %c0_i32_0 = arith.constant 0 : i32
    return %arg0, %c0_i32 : i32, i32
  }
}

</mosaic_0001>

<llo_original>
// kernel: tpu_custom_call.1
$region0: #{tpu_custom_call.1}
  #allocation0 [shape = 'u32[]', space=smem, size = 0x4, offset = 0x4, fixed_abs, tag = 'smem constant byte address 0x4 - core index']
  #allocation1 [shape = 'u32[144,128]{1,0:T(1,128)}', space=vmem, size = 0x12000, scoped, tag = 'internal scratch']
  %s0 = inlined_call_operand.hbm [shape: f32[16,128], index: 0, kind: input, shape index: {}]
  %s1 = inlined_call_operand.hbm [shape: f32[16,128], index: 1, kind: input, shape index: {}]
  %s2 = inlined_call_operand.hbm [shape: f32[16,128], index: 2, kind: output, shape index: {0}]
  %s3 = inlined_call_operand.hbm [shape: f32[16,128], index: 3, kind: output, shape index: {1}]
  %4 = xla_tuple %s2, %s3
  %s5 = sld [smem:[#allocation0]]
  $region34: #{tpu_custom_call.1} parent=0
    _
  %s7 = ssub.s32 1, %s5
  %s8 = scalar_select 0, %s7, %s5
  $region1: #{tpu_custom_call.1} parent=0
    #allocation2 [shape = 'u8[8192]{0}', space=vmem, size = 0x2000, scoped, tag = 'input window, operand 0, single buffered']
    #allocation3 [shape = 's32[1]{0}', space=sflag, size = 0x4, scoped, tag = 'scoped memory for tpu_custom_call.1']
    #allocation4 [shape = 's32[1]{0}', space=sflag, size = 0x4, scoped, tag = 'scoped memory for tpu_custom_call.1']
    #allocation5 [shape = 'u8[8192]{0}', space=vmem, size = 0x2000, scoped, tag = 'input window, operand 1, single buffered']
    #allocation6 [shape = 's32[1]{0}', space=sflag, size = 0x4, scoped, tag = 'scoped memory for tpu_custom_call.1']
    #allocation7 [shape = 'u8[8192]{0}', space=vmem, size = 0x2000, scoped, tag = 'output window, operand 0, single buffered']
    #allocation8 [shape = 'u8[8192]{0}', space=vmem, size = 0x2000, scoped, tag = 'output window, operand 1, single buffered']
    #allocation9 [shape = 's32[1]{0}', space=sflag, size = 0x4, scoped, tag = 'scoped memory for tpu_custom_call.1']
    %9 = vsyncpa [#allocation3], 0
    %10 = vsyncpa [#allocation6], 0
    %11 = vsyncpa [#allocation4], 0
    %12 = vsyncpa [#allocation9], 0
    // Predicated region
    $region2: #{tpu_custom_call.1} parent=1 // pred_check
      _
    $region3: #{tpu_custom_call.1} parent=1 // pred_check_branch
      %14 = sbr.rel (0) target = $region5
    $region4: #{tpu_custom_call.1} parent=1 // pred_region
      %s16 = ssub.s32 256, 256
      %17 = vsyncadd [#allocation3], %s16
      %s18 = sshll.u32 [#allocation2], 4
      %s19 = int_to_ptr.vmem [resolvable:$true] %s18
      %24 = dma.hbm_to_vmem [thread:$0]  %s0, 256, %s19, [#allocation3], 128, 128, 8
    $region5: #{tpu_custom_call.1} parent=1 // pred_fallthru
      _
    // Predicated region
    $region6: #{tpu_custom_call.1} parent=1 // pred_check
      _
    $region7: #{tpu_custom_call.1} parent=1 // pred_check_branch
      %26 = sbr.rel (0) target = $region9
    $region8: #{tpu_custom_call.1} parent=1 // pred_region
      %s28 = ssub.s32 256, 256
      %29 = vsyncadd [#allocation6], %s28
      %s30 = sshll.u32 [#allocation5], 4
      %s31 = int_to_ptr.vmem [resolvable:$true] %s30
      %36 = dma.hbm_to_vmem [thread:$0]  %s1, 256, %s31, [#allocation6], 128, 128, 8
    $region9: #{tpu_custom_call.1} parent=1 // pred_fallthru
      _
    // Predicated region
    $region10: #{tpu_custom_call.1} parent=1 // pred_check
      _
    $region11: #{tpu_custom_call.1} parent=1 // pred_check_branch
      %38 = sbr.rel (0) target = $region13
    $region12: #{tpu_custom_call.1} parent=1 // pred_region
      %39 = dma.done [#allocation3], 256
    $region13: #{tpu_custom_call.1} parent=1 // pred_fallthru
      _
    // Predicated region
    $region14: #{tpu_custom_call.1} parent=1 // pred_check
      _
    $region15: #{tpu_custom_call.1} parent=1 // pred_check_branch
      %41 = sbr.rel (0) target = $region17
    $region16: #{tpu_custom_call.1} parent=1 // pred_region
      %42 = dma.done [#allocation6], 256
    $region17: #{tpu_custom_call.1} parent=1 // pred_fallthru
      _
    %v43 = vld [vmem:[#allocation2] sm:$0xff]
    %v44 = vld [vmem:[#allocation2 + $0x8] sm:$0xff]
    %v45 = vadd.f32 %v43, 1e-08
    %v46 = vadd.f32 %v44, 1e-08
    %v47 = vld [vmem:[#allocation5] sm:$0xff]
    %v48 = vld [vmem:[#allocation5 + $0x8] sm:$0xff]
    %v49 = vmul.f32 %v45, %v45
    %v50 = vmul.f32 %v46, %v46
    %v51 = vmul.f32 %v47, %v47
    %v52 = vmul.f32 %v48, %v48
    %v53 = vadd.f32 %v49, %v51
    %v54 = vadd.f32 %v50, %v52
    %v55 = vrsqrt.pop %v53
    %v56 = vmul.f32 %v53, %v55
    %vm57 = vcmp.eq.f32.partialorder %v53, inf
    %v58 = vsel %vm57, %v53, %v56
    %vm59 = vcmp.eq.f32.partialorder %v53, 0.0
    %v60 = vand.u32 %v53, 2147483648
    %v61 = vsel %vm59, %v60, %v58
    %v62 = vrsqrt.pop %v54
    %v63 = vmul.f32 %v54, %v62
    %vm64 = vcmp.eq.f32.partialorder %v54, inf
    %v65 = vsel %vm64, %v54, %v63
    %vm66 = vcmp.eq.f32.partialorder %v54, 0.0
    %v67 = vand.u32 %v54, 2147483648
    %v68 = vsel %vm66, %v67, %v65
    %69 = vst [vmem:[#allocation7] sm:$0xff] %v61
    %70 = vst [vmem:[#allocation7 + $0x8] sm:$0xff] %v68
    %v71 = vand.u32 2147483647, %v45
    %v72 = vand.u32 2147483647, %v46
    %v73 = vand.u32 2147483647, %v47
    %v74 = vand.u32 2147483647, %v48
    %v75 = vmax.f32 %v71, %v73
    %v76 = vmax.f32 %v72, %v74
    %v77 = vmin.f32 %v71, %v73
    %v78 = vmin.f32 %v72, %v74
    %v79 = vmul.f32 %v75, 0.41421357
    %v80 = vmul.f32 %v76, 0.41421357
    %vm81 = vcmp.gt.f32.partialorder %v77, %v79
    %vm82 = vcmp.gt.f32.partialorder %v78, %v80
    %v83 = vsub.f32 %v77, %v75
    %v84 = vsub.f32 %v78, %v76
    %v85 = vsel %vm81, %v83, %v77
    %v86 = vsel %vm82, %v84, %v78
    %v87 = vadd.f32 %v77, %v75
    %v88 = vadd.f32 %v78, %v76
    %v89 = vsel %vm81, %v87, %v75
    %v90 = vsel %vm82, %v88, %v76
    %v91 = vmax.f32 %v89, 1e-30
    %v92 = vmax.f32 %v90, 1e-30
    %v93 = vrcp.pop %v91
    %v94 = vrcp.pop %v92
    %v95 = vmul.f32 %v91, %v93
    %v96 = vmul.f32 %v92, %v94
    %v97 = vsub.f32 2.0, %v95
    %v98 = vsub.f32 2.0, %v96
    %v99 = vmul.f32 %v93, %v97
    %v100 = vmul.f32 %v94, %v98
    %v101 = vmul.f32 %v85, %v99
    %v102 = vmul.f32 %v86, %v100
    %v103 = vmul.f32 %v91, %v101
    %v104 = vmul.f32 %v92, %v102
    %v105 = vsub.f32 %v85, %v103
    %v106 = vsub.f32 %v86, %v104
    %v107 = vmul.f32 %v99, %v105
    %v108 = vmul.f32 %v100, %v106
    %v109 = vadd.f32 %v101, %v107
    %v110 = vadd.f32 %v102, %v108
    %v111 = vmul.f32 %v109, %v109
    %v112 = vmul.f32 %v110, %v110
    %v113 = vmul.f32 %v111, 0.080537446
    %v114 = vmul.f32 %v112, 0.080537446
    %v115 = vsub.f32 %v113, 0.13877685
    %v116 = vsub.f32 %v114, 0.13877685
    %v117 = vmul.f32 %v115, %v111
    %v118 = vmul.f32 %v116, %v112
    %v119 = vadd.f32 %v117, 0.19977711
    %v120 = vadd.f32 %v118, 0.19977711
    %v121 = vmul.f32 %v119, %v111
    %v122 = vmul.f32 %v120, %v112
    %v123 = vsub.f32 %v121, 0.3333295
    %v124 = vsub.f32 %v122, 0.3333295
    %v125 = vsel %vm81, 0.7853982, 0.0
    %v126 = vsel %vm82, 0.7853982, 0.0
    %v127 = vmul.f32 %v123, %v111
    %v128 = vmul.f32 %v124, %v112
    %v129 = vmul.f32 %v127, %v109
    %v130 = vmul.f32 %v128, %v110
    %v131 = vadd.f32 %v129, %v109
    %v132 = vadd.f32 %v130, %v110
    %v133 = vadd.f32 %v125, %v131
    %v134 = vadd.f32 %v126, %v132
    %vm135 = vcmp.gt.f32.partialorder %v73, %v71
    %vm136 = vcmp.gt.f32.partialorder %v74, %v72
    %v137 = vsub.f32 1.5707964, %v133
    %v138 = vsub.f32 1.5707964, %v134
    %v139 = vsel %vm135, %v137, %v133
    %v140 = vsel %vm136, %v138, %v134
    %vm141 = vcmp.lt.f32.partialorder %v45, 0.0
    %vm142 = vcmp.lt.f32.partialorder %v46, 0.0
    %v143 = vsub.f32 3.1415927, %v139
    %v144 = vsub.f32 3.1415927, %v140
    %v145 = vsel %vm141, %v143, %v139
    %v146 = vsel %vm142, %v144, %v140
    %v149 = vand.u32 %v47, 2147483648
    %v150 = vand.u32 %v48, 2147483648
    %v153 = vor.u32 %v145, %v149
    %v154 = vor.u32 %v146, %v150
    %157 = vst [vmem:[#allocation8] sm:$0xff] %v153
    %158 = vst [vmem:[#allocation8 + $0x8] sm:$0xff] %v154
    // Predicated region
    $region18: #{tpu_custom_call.1} parent=1 // pred_check
      _
    $region19: #{tpu_custom_call.1} parent=1 // pred_check_branch
      %160 = sbr.rel (0) target = $region21
    $region20: #{tpu_custom_call.1} parent=1 // pred_region
      %s162 = ssub.s32 256, 256
      %163 = vsyncadd [#allocation4], %s162
      %s164 = sshll.u32 [#allocation7], 4
      %s165 = int_to_ptr.vmem [resolvable:$true] %s164
      %170 = dma.vmem_to_hbm [thread:$0]  %s165, 256, %s2, [#allocation4], 128, 128, 8
    $region21: #{tpu_custom_call.1} parent=1 // pred_fallthru
      _
    // Predicated region
    $region22: #{tpu_custom_call.1} parent=1 // pred_check
      _
    $region23: #{tpu_custom_call.1} parent=1 // pred_check_branch
      %172 = sbr.rel (0) target = $region25
    $region24: #{tpu_custom_call.1} parent=1 // pred_region
      %s174 = ssub.s32 256, 256
      %175 = vsyncadd [#allocation9], %s174
      %s176 = sshll.u32 [#allocation8], 4
      %s177 = int_to_ptr.vmem [resolvable:$true] %s176
      %182 = dma.vmem_to_hbm [thread:$0]  %s177, 256, %s3, [#allocation9], 128, 128, 8
    $region25: #{tpu_custom_call.1} parent=1 // pred_fallthru
      _
    // Predicated region
    $region26: #{tpu_custom_call.1} parent=1 // pred_check
      _
    $region27: #{tpu_custom_call.1} parent=1 // pred_check_branch
      %184 = sbr.rel (0) target = $region29
    $region28: #{tpu_custom_call.1} parent=1 // pred_region
      %185 = dma.done [#allocation4], 256
    $region29: #{tpu_custom_call.1} parent=1 // pred_fallthru
      _
    // Predicated region
    $region30: #{tpu_custom_call.1} parent=1 // pred_check
      _
    $region31: #{tpu_custom_call.1} parent=1 // pred_check_branch
      %187 = sbr.rel (0) target = $region33
    $region32: #{tpu_custom_call.1} parent=1 // pred_region
      %188 = dma.done [#allocation9], 256
    $region33: #{tpu_custom_call.1} parent=1 // pred_fallthru
      _
    %189 = vsyncpa [#allocation3], 1
    %190 = vsyncpa [#allocation6], 1
    %191 = vsyncpa [#allocation4], 1
    %192 = vsyncpa [#allocation9], 1

</llo_original>
